<compile_context>
chip_gen: v5e
topology: v5e:2x2
jax: 0.10.0
libtpu: 0.0.40
codegen_flags: <defaults>
</compile_context>

<pallas_src>
import jax
import jax.numpy as jnp
from jax.experimental import pallas as pl
from jax.experimental.pallas import tpu as pltpu


def _prompt_assemble_kernel(prefix_ref, ctx_ref, suffix_ref, out_ref):
    # prefix_ref: (C_BLK, 1, D)      per-class SOS embedding
    # ctx_ref:    (n_ctx, D)         shared learned context (same block every step)
    # suffix_ref: (C_BLK, S_suf, D)  per-class class-name + EOS + pad embeddings
    # out_ref:    (C_BLK, L, D)      L = 1 + n_ctx + S_suf
    c_blk = out_ref.shape[0]
    n_ctx, d = ctx_ref.shape
    out_dtype = out_ref.dtype

    # prefix -> seq positions [0 : 1]
    out_ref[:, 0:1, :] = prefix_ref[...].astype(out_dtype)

    # shared ctx, broadcast over the class block -> seq positions [1 : 1+n_ctx]
    ctx = ctx_ref[...].astype(out_dtype)
    out_ref[:, 1:1 + n_ctx, :] = jnp.broadcast_to(ctx[None, :, :], (c_blk, n_ctx, d))

    # suffix -> seq positions [1+n_ctx : L]
    out_ref[:, 1 + n_ctx:, :] = suffix_ref[...].astype(out_dtype)


def _pick_class_block(n_cls, n_ctx, s_suf, d, itemsize,
                      max_class_block=128,
                      vmem_budget_bytes=20 * 1024 * 1024):
    """Largest class block that keeps double-buffered in/out tiles under budget."""
    seq_len = 1 + n_ctx + s_suf
    # VMEM bytes per class per pipeline buffer: prefix + suffix inputs + full
    # output row-block (ctx block is shared and tiny).  Default pipelining keeps
    # two buffers of each in flight.
    per_class = (1 + s_suf + seq_len) * d * itemsize
    c_blk = vmem_budget_bytes // (2 * per_class)
    c_blk = int(max(1, min(max_class_block, n_cls, c_blk)))
    # Keep at least 2 grid steps when there is more than one class so both
    # TensorCores on v7x get work on the "parallel" class axis.
    if n_cls > 1 and -(-n_cls // c_blk) < 2:
        c_blk = -(-n_cls // 2)
    return c_blk


def prompt_learner_forward(token_prefix, ctx, token_suffix, *,
                           class_block=None, out_dtype=None):
    """Pallas implementation of PromptLearner.forward (class_token_position='end').

    token_prefix: (n_cls, 1, D)
    ctx:          (n_ctx, D)       (the 2-D nn.Parameter case of the module)
    token_suffix: (n_cls, S_suf, D)
    returns:      (n_cls, 1 + n_ctx + S_suf, D)
    """
    if ctx.ndim != 2:
        # TODO(synk): per-class 3-D ctx (the `csc` variant) not implemented.
        raise NotImplementedError("only the 2-D shared-ctx variant is implemented")

    n_cls, p_len, d = token_prefix.shape
    assert p_len == 1, token_prefix.shape
    n_ctx = ctx.shape[0]
    s_suf = token_suffix.shape[1]
    seq_len = 1 + n_ctx + s_suf
    out_dtype = token_prefix.dtype if out_dtype is None else jnp.dtype(out_dtype)

    itemsize = jnp.dtype(out_dtype).itemsize
    c_blk = class_block if class_block is not None else _pick_class_block(
        n_cls, n_ctx, s_suf, d, itemsize)
    c_blk = int(min(c_blk, n_cls))
    n_blocks = -(-n_cls // c_blk)  # ceil div; trailing partial block is masked by Pallas

    return pl.pallas_call(
        _prompt_assemble_kernel,
        out_shape=jax.ShapeDtypeStruct((n_cls, seq_len, d), out_dtype),
        grid=(n_blocks,),
        in_specs=[
            pl.BlockSpec((c_blk, 1, d), lambda i: (i, 0, 0)),       # prefix, per class-block
            pl.BlockSpec((n_ctx, d), lambda i: (0, 0)),             # shared ctx (same block)
            pl.BlockSpec((c_blk, s_suf, d), lambda i: (i, 0, 0)),   # suffix, per class-block
        ],
        out_specs=pl.BlockSpec((c_blk, seq_len, d), lambda i: (i, 0, 0)),
        compiler_params=pltpu.CompilerParams(
            dimension_semantics=("parallel",),       # shards class blocks across v7x's 2 TCs
            vmem_limit_bytes=32 * 1024 * 1024,       # raise v5e's 16 MiB default; safe on all chips
        ),
    )(token_prefix, ctx, token_suffix)


if __name__ == "__main__":
    # Small, deterministic synthetic setup consistent with the module:
    #   n_cls classnames, n_ctx=16 learned context tokens, ctx_dim feature size,
    #   total tokenized length L  ->  suffix length = L - 1 - n_ctx.
    n_cls = 4
    n_ctx = 16
    ctx_dim = 128
    total_len = 32                    # tokenized prompt length (small stand-in)
    s_suf = total_len - 1 - n_ctx     # = 15

    key = jax.random.PRNGKey(0)
    k_ctx, k_emb = jax.random.split(key)

    # ctx_vectors ~ N(0, 0.02) as in nn.init.normal_(ctx_vectors, std=0.02)
    ctx = (0.02 * jax.random.normal(k_ctx, (n_ctx, ctx_dim))).astype(jnp.float32)

    # Synthetic frozen token embeddings of the tokenized class prompts
    # (stand-in for conch_model.text.token_embedding(tokenized_prompts)).
    embedding = jax.random.normal(k_emb, (n_cls, total_len, ctx_dim)).astype(jnp.float32)
    token_prefix = embedding[:, :1, :]              # SOS
    token_suffix = embedding[:, 1 + n_ctx:, :]      # class tokens + EOS + pad

    prompts = prompt_learner_forward(token_prefix, ctx, token_suffix)
    prompts = jax.block_until_ready(prompts)

    # Reference (plain JAX) check of the forward semantics.
    ctx_expanded = jnp.broadcast_to(ctx[None, :, :], (n_cls, n_ctx, ctx_dim))
    ref = jnp.concatenate([token_prefix, ctx_expanded, token_suffix], axis=1)

    assert prompts.shape == (n_cls, total_len, ctx_dim), prompts.shape
    assert prompts.dtype == jnp.float32, prompts.dtype
    assert jnp.allclose(prompts, ref), "mismatch vs reference concat"

    print("KERNEL_OK")
</pallas_src>

<mosaic_0001>
module attributes {stable_mosaic.version = 11 : i64} {
  func.func @_prompt_assemble_kernel(%arg0: i32, %arg1: memref<2x1x128xf32, #tpu.memory_space<vmem>>, %arg2: memref<16x128xf32, #tpu.memory_space<vmem>>, %arg3: memref<2x15x128xf32, #tpu.memory_space<vmem>>, %arg4: memref<2x32x128xf32, #tpu.memory_space<vmem>>) attributes {dimension_semantics = [#tpu.dimension_semantics<parallel>], iteration_bounds = array<i64: 2>, scalar_prefetch = 0 : i64, scratch_operands = 0 : i64, tpu.core_type = #tpu.core_type<tc>, window_params = [{transform_indices = @transform_0, window_bounds = array<i64: 2, 1, 128>}, {pipeline_mode = #tpu.pipeline_mode<synchronous>, transform_indices = @transform_1, window_bounds = array<i64: 16, 128>}, {transform_indices = @transform_2, window_bounds = array<i64: 2, 15, 128>}, {transform_indices = @transform_3, window_bounds = array<i64: 2, 32, 128>}]} {
    %c0 = arith.constant 0 : index
    %c0_0 = arith.constant 0 : index
    %c0_1 = arith.constant 0 : index
    %0 = vector.load %arg1[%c0, %c0_0, %c0_1] : memref<2x1x128xf32, #tpu.memory_space<vmem>>, vector<2x1x128xf32>
    %c0_2 = arith.constant 0 : index
    %c0_3 = arith.constant 0 : index
    %c0_4 = arith.constant 0 : index
    %1 = vector.load %arg4[%c0_2, %c0_3, %c0_4] : memref<2x32x128xf32, #tpu.memory_space<vmem>>, vector<2x1x128xf32>
    tpu.vector_store %arg4[%c0_2, %c0_3, %c0_4], %0 {strides = array<i32>} : memref<2x32x128xf32, #tpu.memory_space<vmem>>, vector<2x1x128xf32>,
    %c0_5 = arith.constant 0 : index
    %c0_6 = arith.constant 0 : index
    %2 = vector.load %arg2[%c0_5, %c0_6] : memref<16x128xf32, #tpu.memory_space<vmem>>, vector<16x128xf32>
    %3 = vector.shape_cast %2 : vector<16x128xf32> to vector<1x16x128xf32>
    %4 = vector.shape_cast %3 : vector<1x16x128xf32> to vector<1x16x128xf32>
    %5 = vector.broadcast %4 : vector<1x16x128xf32> to vector<2x16x128xf32>
    %c0_7 = arith.constant 0 : index
    %c1 = arith.constant 1 : index
    %c0_8 = arith.constant 0 : index
    %6 = vector.load %arg4[%c0_7, %c1, %c0_8] : memref<2x32x128xf32, #tpu.memory_space<vmem>>, vector<2x16x128xf32>
    tpu.vector_store %arg4[%c0_7, %c1, %c0_8], %5 {strides = array<i32>} : memref<2x32x128xf32, #tpu.memory_space<vmem>>, vector<2x16x128xf32>,
    %c0_9 = arith.constant 0 : index
    %c0_10 = arith.constant 0 : index
    %c0_11 = arith.constant 0 : index
    %7 = vector.load %arg3[%c0_9, %c0_10, %c0_11] : memref<2x15x128xf32, #tpu.memory_space<vmem>>, vector<2x15x128xf32>
    %c0_12 = arith.constant 0 : index
    %c17 = arith.constant 17 : index
    %c0_13 = arith.constant 0 : index
    %8 = vector.load %arg4[%c0_12, %c17, %c0_13] : memref<2x32x128xf32, #tpu.memory_space<vmem>>, vector<2x15x128xf32>
    tpu.vector_store %arg4[%c0_12, %c17, %c0_13], %7 {strides = array<i32>} : memref<2x32x128xf32, #tpu.memory_space<vmem>>, vector<2x15x128xf32>,
    return
  }
  func.func @transform_0(%arg0: i32) -> (i32, i32, i32) {
    %c0_i32 = arith.constant 0 : i32
    %c0_i32_0 = arith.constant 0 : i32
    %c0_i32_1 = arith.constant 0 : i32
    return %arg0, %c0_i32, %c0_i32_0 : i32, i32, i32
  }
  func.func @transform_1(%arg0: i32) -> (i32, i32) {
    %c0_i32 = arith.constant 0 : i32
    %c0_i32_0 = arith.constant 0 : i32
    %c0_i32_1 = arith.constant 0 : i32
    return %c0_i32, %c0_i32_0 : i32, i32
  }
  func.func @transform_2(%arg0: i32) -> (i32, i32, i32) {
    %c0_i32 = arith.constant 0 : i32
    %c0_i32_0 = arith.constant 0 : i32
    %c0_i32_1 = arith.constant 0 : i32
    return %arg0, %c0_i32, %c0_i32_0 : i32, i32, i32
  }
  func.func @transform_3(%arg0: i32) -> (i32, i32, i32) {
    %c0_i32 = arith.constant 0 : i32
    %c0_i32_0 = arith.constant 0 : i32
    %c0_i32_1 = arith.constant 0 : i32
    return %arg0, %c0_i32, %c0_i32_0 : i32, i32, i32
  }
}

</mosaic_0001>

<llo_original>
// kernel: tpu_custom_call.1
$region0: #{tpu_custom_call.1}
  #allocation0 [shape = 'u32[]', space=smem, size = 0x4, offset = 0x4, fixed_abs, tag = 'smem constant byte address 0x4 - core index']
  #allocation1 [shape = 'u32[72,128]{1,0:T(1,128)}', space=vmem, size = 0x9000, scoped, tag = 'internal scratch']
  %s0 = inlined_call_operand.vmem [shape: f32[4,1,128], index: 0, kind: input, shape index: {}]
  %s1 = inlined_call_operand.vmem [shape: f32[16,128], index: 1, kind: input, shape index: {}]
  %s2 = inlined_call_operand.vmem [shape: f32[4,15,128], index: 2, kind: input, shape index: {}]
  %s3 = inlined_call_operand.hbm [shape: f32[4,32,128], index: 3, kind: output, shape index: {}]
  %s4 = sld [smem:[#allocation0]]
  $region45: #{tpu_custom_call.1} parent=0
    _
  %s6 = ssub.s32 1, %s4
  %s7 = scalar_select 0, %s6, %s4
  $region1: #{tpu_custom_call.1} parent=0
    #allocation2 [shape = 'u8[65536]{0}', space=vmem, size = 0x10000, scoped, tag = 'output window, operand 0']
    #allocation3 [shape = 's32[2]{0}', space=sflag, size = 0x8, scoped, tag = 'scoped memory for tpu_custom_call.1']
    %8 = vsyncpa [#allocation3], 0
    %s9 = scalar_lea.sflag [#allocation3], 1
    %10 = vsyncpa %s9, 0
    loop: start=0, step=1, limit=4
    $region2: #{tpu_custom_call.1} parent=1 // loop_pre_header
      _
    $region3: #{tpu_custom_call.1} parent=1 // loop_header
      %s12 = sphi 0, %s16
      %p13 = scmp.ge.s32.totalorder %s12, 4
      %s22 = sphi 0, %s24
      %s25 = sphi 0, %s22
      %s26 = sphi 0, %s25
      %s42 = sphi 0, %s26
      %s46 = sphi 0, %s46
      %s48 = sphi 0, %s46
      %s49 = sphi 0, %s48
      %s63 = sphi 0, %s49
      %s69 = sphi 0, %s71
      %s72 = sphi 0, %s69
      %s73 = sphi 0, %s72
      %s89 = sphi 0, %s73
      %s95 = sphi 0, %s97
      %s98 = sphi 0, %s95
      %s99 = sphi 0, %s98
      %s115 = sphi 0, %s99
    $region4: #{tpu_custom_call.1} parent=1 // loop_header_branch
      %15 = sbr.rel (%p13) target = $region8
    $region5: #{tpu_custom_call.1} parent=1 // loop_body
      %s17 = ssub.s32 %s12, 1
      %s18 = ssub.s32 %s12, 2
      %s19 = sadd.s32 %s12, 1
      %s20 = ssub.s32 %s12, %s19
      %p21 = scmp.eq.s32.totalorder %s20, 0
      %s23 = sadd.s32 %s22, 1
      %s24 = scalar_select %p21, %s22, %s23
      %p27 = pneg %p21
      %p28 = scmp.eq.s32.totalorder %s12, 1
      %p29 = por %p27, %p28
      %p30 = scmp.ne.s32.totalorder %s22, %s25
      %p31 = scmp.eq.s32.totalorder %s12, 0
      %p32 = por %p30, %p31
      %p33 = scmp.ne.s32.totalorder %s22, %s25
      %p34 = scmp.eq.s32.totalorder %s17, 1
      %p35 = por %p33, %p34
      %p36 = scmp.ne.s32.totalorder %s25, %s26
      %p37 = scmp.eq.s32.totalorder %s17, 0
      %p38 = por %p36, %p37
      %p39 = scmp.ne.s32.totalorder %s25, %s26
      %p40 = scmp.eq.s32.totalorder %s18, 1
      %p41 = por %p39, %p40
      %p43 = scmp.ne.s32.totalorder %s26, %s42
      %p44 = scmp.eq.s32.totalorder %s18, 0
      %p45 = por %p43, %p44
      %s47 = sadd.s32 %s46, 1
      %p50 = scmp.eq.s32.totalorder %s12, 1
      %p51 = scmp.ne.s32.totalorder %s46, %s48
      %p52 = scmp.eq.s32.totalorder %s12, 0
      %p53 = por %p51, %p52
      %p54 = scmp.ne.s32.totalorder %s46, %s48
      %p55 = scmp.eq.s32.totalorder %s17, 1
      %p56 = por %p54, %p55
      %p57 = scmp.ne.s32.totalorder %s48, %s49
      %p58 = scmp.eq.s32.totalorder %s17, 0
      %p59 = por %p57, %p58
      %p60 = scmp.ne.s32.totalorder %s48, %s49
      %p61 = scmp.eq.s32.totalorder %s18, 1
      %p62 = por %p60, %p61
      %p64 = scmp.ne.s32.totalorder %s49, %s63
      %p65 = scmp.eq.s32.totalorder %s18, 0
      %p66 = por %p64, %p65
      %s67 = ssub.s32 %s12, %s19
      %p68 = scmp.eq.s32.totalorder %s67, 0
      %s70 = sadd.s32 %s69, 1
      %s71 = scalar_select %p68, %s69, %s70
      %p74 = pneg %p68
      %p75 = scmp.eq.s32.totalorder %s12, 1
      %p76 = por %p74, %p75
      %p77 = scmp.ne.s32.totalorder %s69, %s72
      %p78 = scmp.eq.s32.totalorder %s12, 0
      %p79 = por %p77, %p78
      %p80 = scmp.ne.s32.totalorder %s69, %s72
      %p81 = scmp.eq.s32.totalorder %s17, 1
      %p82 = por %p80, %p81
      %p83 = scmp.ne.s32.totalorder %s72, %s73
      %p84 = scmp.eq.s32.totalorder %s17, 0
      %p85 = por %p83, %p84
      %p86 = scmp.ne.s32.totalorder %s72, %s73
      %p87 = scmp.eq.s32.totalorder %s18, 1
      %p88 = por %p86, %p87
      %p90 = scmp.ne.s32.totalorder %s73, %s89
      %p91 = scmp.eq.s32.totalorder %s18, 0
      %p92 = por %p90, %p91
      %s93 = ssub.s32 %s12, %s19
      %p94 = scmp.eq.s32.totalorder %s93, 0
      %s96 = sadd.s32 %s95, 1
      %s97 = scalar_select %p94, %s95, %s96
      %p100 = pneg %p94
      %p101 = scmp.eq.s32.totalorder %s12, 1
      %p102 = por %p100, %p101
      %p103 = scmp.ne.s32.totalorder %s95, %s98
      %p104 = scmp.eq.s32.totalorder %s12, 0
      %p105 = por %p103, %p104
      %p106 = scmp.ne.s32.totalorder %s95, %s98
      %p107 = scmp.eq.s32.totalorder %s17, 1
      %p108 = por %p106, %p107
      %p109 = scmp.ne.s32.totalorder %s98, %s99
      %p110 = scmp.eq.s32.totalorder %s17, 0
      %p111 = por %p109, %p110
      %p112 = scmp.ne.s32.totalorder %s98, %s99
      %p113 = scmp.eq.s32.totalorder %s18, 1
      %p114 = por %p112, %p113
      %p116 = scmp.ne.s32.totalorder %s99, %s115
      %p117 = scmp.eq.s32.totalorder %s18, 0
      %p118 = por %p116, %p117
      %p119 = scmp.le.s32.totalorder 1, %s12
      %p120 = scmp.lt.s32.totalorder %s12, 3
      %p121 = pnand %p119, %p120
      %p122 = pneg %p121
      // Predicated region
      $region9: #{tpu_custom_call.1} parent=5 // pred_check
        _
      $region10: #{tpu_custom_call.1} parent=5 // pred_check_branch
        %124 = sbr.rel (%p121) target = $region12
      $region11: #{tpu_custom_call.1} parent=5 // pred_region
        %s125 = ssub.s32 %s12, 1
        // Predicated region
        $region13: #{tpu_custom_call.1} parent=11 // pred_check
          %p126 = pneg %p59
        $region14: #{tpu_custom_call.1} parent=11 // pred_check_branch
          %128 = sbr.rel (%p126) target = $region16
        $region15: #{tpu_custom_call.1} parent=11 // pred_region
          _
        $region16: #{tpu_custom_call.1} parent=11 // pred_fallthru
          _
      $region12: #{tpu_custom_call.1} parent=5 // pred_fallthru
        _
      %p129 = scmp.lt.s32.totalorder %s12, 2
      // Predicated region
      $region17: #{tpu_custom_call.1} parent=5 // pred_check
        %p130 = pneg %p129
      $region18: #{tpu_custom_call.1} parent=5 // pred_check_branch
        %132 = sbr.rel (%p130) target = $region20
      $region19: #{tpu_custom_call.1} parent=5 // pred_region
        // Predicated region
        $region21: #{tpu_custom_call.1} parent=19 // pred_check
          %p133 = pneg %p32
        $region22: #{tpu_custom_call.1} parent=19 // pred_check_branch
          %135 = sbr.rel (%p133) target = $region24
        $region23: #{tpu_custom_call.1} parent=19 // pred_region
          %s136 = smul.u32 2, %s12
          %p137 = scmp.lt.s32.totalorder %s136, 3
          %s138 = scalar_select %p137, %s136, 3
          %s139 = scalar_lea.vmem %s0, %s138
          %s140 = smul.u32 2, %s12
        $region24: #{tpu_custom_call.1} parent=19 // pred_fallthru
          _
        // Predicated region
        $region25: #{tpu_custom_call.1} parent=19 // pred_check
          %p141 = pneg %p79
        $region26: #{tpu_custom_call.1} parent=19 // pred_check_branch
          %143 = sbr.rel (%p141) target = $region28
        $region27: #{tpu_custom_call.1} parent=19 // pred_region
          %s144 = smul.u32 2, %s12
          %p145 = scmp.lt.s32.totalorder %s144, 3
          %s146 = scalar_select %p145, %s144, 3
          %s147 = smul.addr %s146, 2
          %s148 = smul.addr %s147, 8
          %s149 = scalar_lea.vmem %s2, %s148
          %s150 = smul.u32 2, %s12
        $region28: #{tpu_custom_call.1} parent=19 // pred_fallthru
          _
      $region20: #{tpu_custom_call.1} parent=5 // pred_fallthru
        _
      %p151 = scmp.le.s32.totalorder 1, %s12
      %p152 = scmp.lt.s32.totalorder %s12, 3
      %p153 = pnand %p151, %p152
      %p154 = pneg %p153
      // Predicated region
      $region29: #{tpu_custom_call.1} parent=5 // pred_check
        _
      $region30: #{tpu_custom_call.1} parent=5 // pred_check_branch
        %156 = sbr.rel (%p153) target = $region32
      $region31: #{tpu_custom_call.1} parent=5 // pred_region
        %s157 = ssub.s32 %s12, 1
        %s158 = smul.u32 2, %s17
        %p159 = scmp.lt.s32.totalorder %s158, 3
        %s160 = scalar_select %p159, %s158, 3
        %s161 = scalar_lea.vmem %s0, %s160
        %p162 = pneg %p38
        %p163 = pneg %p35
        %p164 = pneg %p59
        %p165 = pneg %p56
        %s166 = smul.u32 2, %s17
        %p167 = scmp.lt.s32.totalorder %s166, 3
        %s168 = scalar_select %p167, %s166, 3
        %s169 = smul.addr %s168, 2
        %s170 = smul.addr %s169, 8
        %s171 = scalar_lea.vmem %s2, %s170
        %p172 = pneg %p85
        %p173 = pneg %p82
        %p174 = pneg %p111
        %p175 = pneg %p108
        %s176 = sand.u32 %s98, 1
        %s177 = scalar_lea.sflag [#allocation3], %s176
        %s178 = sand.u32 %s98, 1
        %s179 = smul.addr %s178, 64
        %s180 = scalar_lea.vmem [#allocation2], %s179
        %s181 = smul.u32 2, %s17
        %p182 = scmp.lt.s32.totalorder %s181, 3
        %s183 = scalar_select %p182, %s181, 3
        %s184 = scalar_lea.vmem %s0, %s183
        %s185 = smul.u32 2, %s17
        %s186 = smul.u32 2, %s17
        %p187 = scmp.lt.s32.totalorder %s186, 3
        %s188 = scalar_select %p187, %s186, 3
        %s189 = smul.addr %s188, 2
        %s190 = smul.addr %s189, 8
        %s191 = scalar_lea.vmem %s2, %s190
        %s192 = smul.u32 2, %s17
        %s193 = smul.u32 2, %s17
        %v194 = vld [vmem:[%s184] sm:$0x1]
        %v195 = vld [vmem:[%s184 + $0x1] sm:$0x1]
        %196 = vst [vmem:[%s180] sm:$0x1] %v194
        %197 = vst [vmem:[%s180 + $0x20] sm:$0x1] %v195
        %v198 = vld [vmem:[%s1] sm:$0xff]
        %v199 = vld [vmem:[%s1 + $0x8] sm:$0xff]
        %200 = vst [vmem:[%s180 + $0x1] sm:$0xff] %v198
        %201 = vst [vmem:[%s180 + $0x9] sm:$0xff] %v199
        %202 = vst [vmem:[%s180 + $0x21] sm:$0xff] %v198
        %203 = vst [vmem:[%s180 + $0x29] sm:$0xff] %v199
        %v204 = vld [vmem:[%s191] sm:$0xff]
        %v205 = vld [vmem:[%s191 + $0x8] sm:$0x7f]
        %v206 = vld [vmem:[%s191 + $0x10] sm:$0xff]
        %v207 = vld [vmem:[%s191 + $0x18] sm:$0x7f]
        %208 = vst [vmem:[%s180 + $0x11] sm:$0xff] %v204
        %209 = vst [vmem:[%s180 + $0x19] sm:$0x7f] %v205
        %210 = vst [vmem:[%s180 + $0x31] sm:$0xff] %v206
        %211 = vst [vmem:[%s180 + $0x39] sm:$0x7f] %v207
        %s212 = sand.u32 %s98, 1
        %s213 = scalar_lea.sflag [#allocation3], %s212
        %s214 = sand.u32 %s98, 1
        %s215 = smul.addr %s214, 64
        %s216 = scalar_lea.vmem [#allocation2], %s215
        // Predicated region
        $region33: #{tpu_custom_call.1} parent=31 // pred_check
          %p217 = pneg %p108
        $region34: #{tpu_custom_call.1} parent=31 // pred_check_branch
          %219 = sbr.rel (%p217) target = $region36
        $region35: #{tpu_custom_call.1} parent=31 // pred_region
          %s220 = smul.u32 2, %s17
          %222 = vsyncadd %s213, 0
          %s223 = smul.addr %s220, 4
          %s224 = smul.addr %s223, 8
          %s225 = scalar_lea.hbm %s3, %s224
          %s226 = sshll.u32 %s216, 4
          %s227 = int_to_ptr.vmem [resolvable:$true] %s226
          %s228 = sshll.u32 %s225, 4
          %s229 = int_to_ptr.hbm [resolvable:$true] %s228
          %234 = dma.vmem_to_hbm [thread:$0]  %s227, 1024, %s229, %s213, 128, 128, 8
        $region36: #{tpu_custom_call.1} parent=31 // pred_fallthru
          _
      $region32: #{tpu_custom_call.1} parent=5 // pred_fallthru
        _
      %p235 = scmp.le.s32.totalorder 2, %s12
      // Predicated region
      $region37: #{tpu_custom_call.1} parent=5 // pred_check
        %p236 = pneg %p235
      $region38: #{tpu_custom_call.1} parent=5 // pred_check_branch
        %238 = sbr.rel (%p236) target = $region40
      $region39: #{tpu_custom_call.1} parent=5 // pred_region
        %s239 = ssub.s32 %s12, 2
        // Predicated region
        $region41: #{tpu_custom_call.1} parent=39 // pred_check
          %p240 = pneg %p114
        $region42: #{tpu_custom_call.1} parent=39 // pred_check_branch
          %242 = sbr.rel (%p240) target = $region44
        $region43: #{tpu_custom_call.1} parent=39 // pred_region
          %s243 = sand.u32 %s99, 1
          %s244 = scalar_lea.sflag [#allocation3], %s243
          %s245 = sand.u32 %s99, 1
          %s246 = smul.addr %s245, 64
          %s247 = scalar_lea.vmem [#allocation2], %s246
          %249 = dma.done %s244, 1024
        $region44: #{tpu_custom_call.1} parent=39 // pred_fallthru
          _
      $region40: #{tpu_custom_call.1} parent=5 // pred_fallthru
        _
    $region6: #{tpu_custom_call.1} parent=1 // loop_footer
      %s16 = sadd.s32 1, %s12
    $region7: #{tpu_custom_call.1} parent=1 // loop_footer_branch
      %11 = sbr.rel target = $region3
    $region8: #{tpu_custom_call.1} parent=1 // loop_exit
      _
    %250 = vsyncpa [#allocation3], 1
    %s251 = scalar_lea.sflag [#allocation3], 1
    %252 = vsyncpa %s251, 1

</llo_original>
